<compile_context>
chip_gen: v6e
topology: v6e:2x2x1
jax: 0.10.0
libtpu: 0.0.40
codegen_flags: <defaults>
</compile_context>

<pallas_src>
import jax
import jax.numpy as jnp
import numpy as np
from jax import lax
from jax.experimental import pallas as pl
from jax.experimental.pallas import tpu as pltpu


def _round_up(a, m):
    return (a + m - 1) // m * m


# ----------------------------------------------------------------------------
# Pallas kernel: one batch tile per grid step, 4 fused batched matmuls.
# ----------------------------------------------------------------------------
def _rwc_kernel(x_ref,      # (BT, F*L)        bf16
                m1_ref,     # (F*L, F1*L1)     bf16   conv1 as dense matrix
                b1_ref,     # (1, F1*L1)       f32
                m2_ref,     # (F1*L1, C2*L2)   bf16   conv2 (BN1 folded)
                b2_ref,     # (1, C2*L2)       f32    (BN1 folded)
                fc1w_ref,   # (C2*L2, H)       bf16   (BN2 folded)
                fc1b_ref,   # (1, H)           f32    (BN2 folded)
                fc2w_ref,   # (H, NO)          bf16
                fc2b_ref,   # (1, NO)          f32
                out_ref):   # (BT, NO)         f32
    cdt = m1_ref.dtype  # matmul-input dtype (bf16)

    # ---- Conv1d (+bias) -> ReLU.  BatchNorm1d is folded into m2/b2. ---------
    h1 = jnp.dot(x_ref[...], m1_ref[...],
                 preferred_element_type=jnp.float32) + b1_ref[...]
    h1 = jnp.maximum(h1, 0.0)

    # ---- Conv2d (full-height kernel, +bias) -> ReLU.  BN2d folded into fc1. -
    h2 = jnp.dot(h1.astype(cdt), m2_ref[...],
                 preferred_element_type=jnp.float32) + b2_ref[...]
    h2 = jnp.maximum(h2, 0.0)

    # ---- Flatten is implicit (activations already channel-major flat). -----
    # ---- fc1 -> Sigmoid ------------------------------------------------------
    h3 = jax.nn.sigmoid(
        jnp.dot(h2.astype(cdt), fc1w_ref[...],
                preferred_element_type=jnp.float32) + fc1b_ref[...])

    # ---- fc2 -> last activation (sigmoid for this synthetic instantiation) --
    y = jnp.dot(h3.astype(cdt), fc2w_ref[...],
                preferred_element_type=jnp.float32) + fc2b_ref[...]
    out_ref[...] = jax.nn.sigmoid(y)


# ----------------------------------------------------------------------------
# Wrapper glue: conv -> dense (Toeplitz) matrices, BN folding, batch tiling.
# ----------------------------------------------------------------------------
def _conv_to_matrix(w, l_in, l_out):
    """Expand a (c_out, c_in, R) stride-1 'valid' conv kernel into a dense
    (c_in*l_in, c_out*l_out) matrix M with
        M[cin*l_in + j, cout*l_out + l] = w[cout, cin, j - l]  for 0 <= j-l < R.
    """
    c_out, c_in, r = w.shape
    w_t = jnp.transpose(w, (1, 2, 0))                       # (c_in, R, c_out)
    cols = []
    for l in range(l_out):
        blk = jnp.zeros((c_in, l_in, c_out), w.dtype)
        blk = blk.at[:, l:l + r, :].set(w_t)
        cols.append(blk)
    m = jnp.stack(cols, axis=-1)                            # (c_in, l_in, c_out, l_out)
    return m.reshape(c_in * l_in, c_out * l_out)


def rolling_window_conv_forward(x, params, rolling_size, *, batch_tile=256,
                                matmul_dtype=jnp.bfloat16):
    B, F, L = x.shape
    R = rolling_size
    F1 = F + 1
    C2 = 2
    L1 = L - R + 1            # stride1 == 1
    L2 = L1 - R + 1           # stride2 == 1
    H = L2 // 2
    NO = params["fc2_b"].shape[0]
    FL, F1L1, C2L2 = F * L, F1 * L1, C2 * L2
    eps = 1e-5

    # --- conv kernels as dense matrices --------------------------------------
    m1 = _conv_to_matrix(params["w1"], L, L1)                 # (F*L, F1*L1)
    m2 = _conv_to_matrix(params["w2"][:, 0, :, :], L1, L2)    # (F1*L1, C2*L2)

    b1row = jnp.repeat(params["b1"], L1)[None, :]             # (1, F1*L1)

    # --- fold BatchNorm1d (eval) into conv2 ----------------------------------
    s1 = params["bn1_gamma"] / jnp.sqrt(params["bn1_var"] + eps)
    t1 = params["bn1_beta"] - params["bn1_mean"] * s1
    s1f = jnp.repeat(s1, L1)
    t1f = jnp.repeat(t1, L1)
    b2row = (jnp.repeat(params["b2"], L2) + t1f @ m2)[None, :]  # (1, C2*L2)
    m2 = s1f[:, None] * m2

    # --- fold BatchNorm2d (eval) into fc1 -------------------------------------
    fc1wT = params["fc1_w"].T                                  # (C2*L2, H)
    s2 = params["bn2_gamma"] / jnp.sqrt(params["bn2_var"] + eps)
    t2 = params["bn2_beta"] - params["bn2_mean"] * s2
    s2f = jnp.repeat(s2, L2)
    t2f = jnp.repeat(t2, L2)
    fc1b = (params["fc1_b"] + t2f @ fc1wT)[None, :]            # (1, H)
    fc1w = s2f[:, None] * fc1wT

    fc2w = params["fc2_w"].T                                   # (H, NO)
    fc2b = params["fc2_b"][None, :]                            # (1, NO)

    # --- batch tiling: batch on the sublane/M axis; >= 2 grid steps ----------
    bt = max(8, min(batch_tile, _round_up(pl.cdiv(B, 2), 8)))
    b_pad = _round_up(B, bt)
    if b_pad // bt < 2:
        b_pad += bt            # keep both v7x TensorCores busy
    n_tiles = b_pad // bt

    x_flat = jnp.pad(x.reshape(B, FL), ((0, b_pad - B), (0, 0)))

    cd = matmul_dtype
    f32 = jnp.float32
    args = (x_flat.astype(cd),
            m1.astype(cd), b1row.astype(f32),
            m2.astype(cd), b2row.astype(f32),
            fc1w.astype(cd), fc1b.astype(f32),
            fc2w.astype(cd), fc2b.astype(f32))

    def const(shape):
        return pl.BlockSpec(shape, lambda i: (0,) * len(shape))

    out = pl.pallas_call(
        _rwc_kernel,
        out_shape=jax.ShapeDtypeStruct((b_pad, NO), jnp.float32),
        grid=(n_tiles,),
        in_specs=[
            pl.BlockSpec((bt, FL), lambda i: (i, 0)),   # x tile (batch on sublanes)
            const((FL, F1L1)),
            const((1, F1L1)),
            const((F1L1, C2L2)),
            const((1, C2L2)),
            const((C2L2, H)),
            const((1, H)),
            const((H, NO)),
            const((1, NO)),
        ],
        out_specs=pl.BlockSpec((bt, NO), lambda i: (i, 0)),   # one block per tile
        compiler_params=pltpu.CompilerParams(
            dimension_semantics=("parallel",),
            vmem_limit_bytes=32 * 1024 * 1024),
    )(*args)

    return out[:B]


# ----------------------------------------------------------------------------
# Deterministic parameter init (torch shape conventions)
# ----------------------------------------------------------------------------
def init_params(key, input_length, num_features, num_output, rolling_size):
    F, R, NO = num_features, rolling_size, num_output
    F1 = F + 1
    C2 = 2
    L1 = input_length - R + 1
    L2 = L1 - R + 1
    H = L2 // 2

    ks = jax.random.split(key, 8)

    def u(k, shape, fan_in):
        bound = 1.0 / float(np.sqrt(fan_in))
        return jax.random.uniform(k, shape, jnp.float32, -bound, bound)

    params = {
        "w1": u(ks[0], (F1, F, R), F * R),        # Conv1d weight (out, in, k)
        "b1": u(ks[1], (F1,), F * R),
        "w2": u(ks[2], (C2, 1, F1, R), F1 * R),   # Conv2d weight (out, in, kh, kw)
        "b2": u(ks[3], (C2,), F1 * R),
        "fc1_w": u(ks[4], (H, C2 * L2), C2 * L2),
        "fc1_b": u(ks[5], (H,), C2 * L2),
        "fc2_w": u(ks[6], (NO, H), H),
        "fc2_b": u(ks[7], (NO,), H),
        # BatchNorm default init / running stats (inference mode)
        "bn1_gamma": jnp.ones((F1,), jnp.float32),
        "bn1_beta": jnp.zeros((F1,), jnp.float32),
        "bn1_mean": jnp.zeros((F1,), jnp.float32),
        "bn1_var": jnp.ones((F1,), jnp.float32),
        "bn2_gamma": jnp.ones((C2,), jnp.float32),
        "bn2_beta": jnp.zeros((C2,), jnp.float32),
        "bn2_mean": jnp.zeros((C2,), jnp.float32),
        "bn2_var": jnp.ones((C2,), jnp.float32),
    }
    return params


# ----------------------------------------------------------------------------
# Pure-JAX reference (for validation only)
# ----------------------------------------------------------------------------
def reference_forward(x, params, rolling_size):
    eps = 1e-5
    # Conv1d -> ReLU -> BN1d(eval)
    o1 = lax.conv_general_dilated(
        x, params["w1"], window_strides=(1,), padding="VALID",
        dimension_numbers=("NCH", "OIH", "NCH"),
    ) + params["b1"][None, :, None]
    o1 = jnp.maximum(o1, 0.0)
    o1 = (o1 - params["bn1_mean"][None, :, None]) / jnp.sqrt(
        params["bn1_var"][None, :, None] + eps
    ) * params["bn1_gamma"][None, :, None] + params["bn1_beta"][None, :, None]
    # unsqueeze(1) -> Conv2d -> ReLU -> BN2d(eval)
    o2 = o1[:, None, :, :]
    o3 = lax.conv_general_dilated(
        o2, params["w2"], window_strides=(1, 1), padding="VALID",
        dimension_numbers=("NCHW", "OIHW", "NCHW"),
    ) + params["b2"][None, :, None, None]
    o3 = jnp.maximum(o3, 0.0)
    o3 = (o3 - params["bn2_mean"][None, :, None, None]) / jnp.sqrt(
        params["bn2_var"][None, :, None, None] + eps
    ) * params["bn2_gamma"][None, :, None, None] + params["bn2_beta"][None, :, None, None]
    # Flatten -> Linear -> Sigmoid -> Linear -> last activation (sigmoid)
    flat = o3.reshape(o3.shape[0], -1)
    h = jax.nn.sigmoid(flat @ params["fc1_w"].T + params["fc1_b"])
    y = h @ params["fc2_w"].T + params["fc2_b"]
    return jax.nn.sigmoid(y)


if __name__ == "__main__":
    # Small shapes consistent with the module's forward.
    B, num_features, input_length = 2, 4, 16
    rolling_size, num_output = 3, 3

    key = jax.random.PRNGKey(0)
    k_x, k_p = jax.random.split(key)
    x = jax.random.normal(k_x, (B, num_features, input_length), jnp.float32)
    params = init_params(k_p, input_length, num_features, num_output, rolling_size)

    out = rolling_window_conv_forward(x, params, rolling_size)
    out = jax.block_until_ready(out)

    ref = reference_forward(x, params, rolling_size)
    # bf16 matmul inputs (f32 accumulation) -> relaxed tolerance vs. f32 reference.
    np.testing.assert_allclose(np.asarray(out), np.asarray(ref), rtol=2e-2, atol=2e-2)

    print("KERNEL_OK")
</pallas_src>

<mosaic_0001>
module attributes {stable_mosaic.version = 11 : i64} {
  func.func @_rwc_kernel(%arg0: i32, %arg1: memref<8x64xbf16, #tpu.memory_space<vmem>>, %arg2: memref<64x70xbf16, #tpu.memory_space<vmem>>, %arg3: memref<1x70xf32, #tpu.memory_space<vmem>>, %arg4: memref<70x24xbf16, #tpu.memory_space<vmem>>, %arg5: memref<1x24xf32, #tpu.memory_space<vmem>>, %arg6: memref<24x6xbf16, #tpu.memory_space<vmem>>, %arg7: memref<1x6xf32, #tpu.memory_space<vmem>>, %arg8: memref<6x3xbf16, #tpu.memory_space<vmem>>, %arg9: memref<1x3xf32, #tpu.memory_space<vmem>>, %arg10: memref<8x3xf32, #tpu.memory_space<vmem>>) attributes {dimension_semantics = [#tpu.dimension_semantics<parallel>], iteration_bounds = array<i64: 2>, scalar_prefetch = 0 : i64, scratch_operands = 0 : i64, tpu.core_type = #tpu.core_type<tc>, window_params = [{transform_indices = @transform_0, window_bounds = array<i64: 8, 64>}, {pipeline_mode = #tpu.pipeline_mode<synchronous>, transform_indices = @transform_1, window_bounds = array<i64: 64, 70>}, {pipeline_mode = #tpu.pipeline_mode<synchronous>, transform_indices = @transform_2, window_bounds = array<i64: 1, 70>}, {pipeline_mode = #tpu.pipeline_mode<synchronous>, transform_indices = @transform_3, window_bounds = array<i64: 70, 24>}, {pipeline_mode = #tpu.pipeline_mode<synchronous>, transform_indices = @transform_4, window_bounds = array<i64: 1, 24>}, {pipeline_mode = #tpu.pipeline_mode<synchronous>, transform_indices = @transform_5, window_bounds = array<i64: 24, 6>}, {pipeline_mode = #tpu.pipeline_mode<synchronous>, transform_indices = @transform_6, window_bounds = array<i64: 1, 6>}, {pipeline_mode = #tpu.pipeline_mode<synchronous>, transform_indices = @transform_7, window_bounds = array<i64: 6, 3>}, {pipeline_mode = #tpu.pipeline_mode<synchronous>, transform_indices = @transform_8, window_bounds = array<i64: 1, 3>}, {transform_indices = @transform_9, window_bounds = array<i64: 8, 3>}]} {
    %c0 = arith.constant 0 : index
    %c0_0 = arith.constant 0 : index
    %0 = vector.load %arg1[%c0, %c0_0] : memref<8x64xbf16, #tpu.memory_space<vmem>>, vector<8x64xbf16>
    %c0_1 = arith.constant 0 : index
    %c0_2 = arith.constant 0 : index
    %1 = vector.load %arg2[%c0_1, %c0_2] : memref<64x70xbf16, #tpu.memory_space<vmem>>, vector<64x70xbf16>
    %cst = arith.constant dense<0.000000e+00> : vector<8x70xf32>
    %2 = tpu.matmul %0, %1, %cst {dimension_numbers = #tpu.dot_dimension_numbers<[1], [0], [0], [1], [0, 0, 1, 1], [], []>} : vector<8x64xbf16>, vector<64x70xbf16>, vector<8x70xf32> -> vector<8x70xf32>
    %c0_3 = arith.constant 0 : index
    %c0_4 = arith.constant 0 : index
    %3 = vector.load %arg3[%c0_3, %c0_4] : memref<1x70xf32, #tpu.memory_space<vmem>>, vector<1x70xf32>
    %4 = vector.broadcast %3 : vector<1x70xf32> to vector<8x70xf32>
    %5 = arith.addf %2, %4 : vector<8x70xf32>
    %cst_5 = arith.constant 0.000000e+00 : f32
    %6 = vector.broadcast %cst_5 : f32 to vector<8x70xf32>
    %7 = arith.maximumf %5, %6 : vector<8x70xf32>
    %8 = arith.truncf %7 : vector<8x70xf32> to vector<8x70xbf16>
    %c0_6 = arith.constant 0 : index
    %c0_7 = arith.constant 0 : index
    %9 = vector.load %arg4[%c0_6, %c0_7] : memref<70x24xbf16, #tpu.memory_space<vmem>>, vector<70x24xbf16>
    %cst_8 = arith.constant dense<0.000000e+00> : vector<8x24xf32>
    %10 = tpu.matmul %8, %9, %cst_8 {dimension_numbers = #tpu.dot_dimension_numbers<[1], [0], [0], [1], [0, 0, 1, 1], [], []>} : vector<8x70xbf16>, vector<70x24xbf16>, vector<8x24xf32> -> vector<8x24xf32>
    %c0_9 = arith.constant 0 : index
    %c0_10 = arith.constant 0 : index
    %11 = vector.load %arg5[%c0_9, %c0_10] : memref<1x24xf32, #tpu.memory_space<vmem>>, vector<1x24xf32>
    %12 = vector.broadcast %11 : vector<1x24xf32> to vector<8x24xf32>
    %13 = arith.addf %10, %12 : vector<8x24xf32>
    %cst_11 = arith.constant 0.000000e+00 : f32
    %14 = vector.broadcast %cst_11 : f32 to vector<8x24xf32>
    %15 = arith.maximumf %13, %14 : vector<8x24xf32>
    %16 = arith.truncf %15 : vector<8x24xf32> to vector<8x24xbf16>
    %c0_12 = arith.constant 0 : index
    %c0_13 = arith.constant 0 : index
    %17 = vector.load %arg6[%c0_12, %c0_13] : memref<24x6xbf16, #tpu.memory_space<vmem>>, vector<24x6xbf16>
    %cst_14 = arith.constant dense<0.000000e+00> : vector<8x6xf32>
    %18 = tpu.matmul %16, %17, %cst_14 {dimension_numbers = #tpu.dot_dimension_numbers<[1], [0], [0], [1], [0, 0, 1, 1], [], []>} : vector<8x24xbf16>, vector<24x6xbf16>, vector<8x6xf32> -> vector<8x6xf32>
    %c0_15 = arith.constant 0 : index
    %c0_16 = arith.constant 0 : index
    %19 = vector.load %arg7[%c0_15, %c0_16] : memref<1x6xf32, #tpu.memory_space<vmem>>, vector<1x6xf32>
    %20 = vector.broadcast %19 : vector<1x6xf32> to vector<8x6xf32>
    %21 = arith.addf %18, %20 : vector<8x6xf32>
    %22 = arith.negf %21 : vector<8x6xf32>
    %23 = math.exp %22 : vector<8x6xf32>
    %cst_17 = arith.constant 1.000000e+00 : f32
    %24 = vector.broadcast %cst_17 : f32 to vector<8x6xf32>
    %25 = arith.addf %24, %23 : vector<8x6xf32>
    %26 = arith.divf %24, %25 : vector<8x6xf32>
    %27 = arith.truncf %26 : vector<8x6xf32> to vector<8x6xbf16>
    %c0_18 = arith.constant 0 : index
    %c0_19 = arith.constant 0 : index
    %28 = vector.load %arg8[%c0_18, %c0_19] : memref<6x3xbf16, #tpu.memory_space<vmem>>, vector<6x3xbf16>
    %cst_20 = arith.constant dense<0.000000e+00> : vector<8x3xf32>
    %29 = tpu.matmul %27, %28, %cst_20 {dimension_numbers = #tpu.dot_dimension_numbers<[1], [0], [0], [1], [0, 0, 1, 1], [], []>} : vector<8x6xbf16>, vector<6x3xbf16>, vector<8x3xf32> -> vector<8x3xf32>
    %c0_21 = arith.constant 0 : index
    %c0_22 = arith.constant 0 : index
    %30 = vector.load %arg9[%c0_21, %c0_22] : memref<1x3xf32, #tpu.memory_space<vmem>>, vector<1x3xf32>
    %31 = vector.broadcast %30 : vector<1x3xf32> to vector<8x3xf32>
    %32 = arith.addf %29, %31 : vector<8x3xf32>
    %33 = arith.negf %32 : vector<8x3xf32>
    %34 = math.exp %33 : vector<8x3xf32>
    %cst_23 = arith.constant 1.000000e+00 : f32
    %35 = vector.broadcast %cst_23 : f32 to vector<8x3xf32>
    %36 = arith.addf %35, %34 : vector<8x3xf32>
    %37 = arith.divf %35, %36 : vector<8x3xf32>
    %c0_24 = arith.constant 0 : index
    %c0_25 = arith.constant 0 : index
    %38 = vector.load %arg10[%c0_24, %c0_25] : memref<8x3xf32, #tpu.memory_space<vmem>>, vector<8x3xf32>
    tpu.vector_store %arg10[%c0_24, %c0_25], %37 {strides = array<i32>} : memref<8x3xf32, #tpu.memory_space<vmem>>, vector<8x3xf32>,
    return
  }
  func.func @transform_0(%arg0: i32) -> (i32, i32) {
    %c0_i32 = arith.constant 0 : i32
    %c0_i32_0 = arith.constant 0 : i32
    return %arg0, %c0_i32 : i32, i32
  }
  func.func @transform_1(%arg0: i32) -> (i32, i32) {
    %c0_i32 = arith.constant 0 : i32
    %c0_i32_0 = arith.constant 0 : i32
    %c0_i32_1 = arith.constant 0 : i32
    return %c0_i32, %c0_i32_0 : i32, i32
  }
  func.func @transform_2(%arg0: i32) -> (i32, i32) {
    %c0_i32 = arith.constant 0 : i32
    %c0_i32_0 = arith.constant 0 : i32
    %c0_i32_1 = arith.constant 0 : i32
    return %c0_i32, %c0_i32_0 : i32, i32
  }
  func.func @transform_3(%arg0: i32) -> (i32, i32) {
    %c0_i32 = arith.constant 0 : i32
    %c0_i32_0 = arith.constant 0 : i32
    %c0_i32_1 = arith.constant 0 : i32
    return %c0_i32, %c0_i32_0 : i32, i32
  }
  func.func @transform_4(%arg0: i32) -> (i32, i32) {
    %c0_i32 = arith.constant 0 : i32
    %c0_i32_0 = arith.constant 0 : i32
    %c0_i32_1 = arith.constant 0 : i32
    return %c0_i32, %c0_i32_0 : i32, i32
  }
  func.func @transform_5(%arg0: i32) -> (i32, i32) {
    %c0_i32 = arith.constant 0 : i32
    %c0_i32_0 = arith.constant 0 : i32
    %c0_i32_1 = arith.constant 0 : i32
    return %c0_i32, %c0_i32_0 : i32, i32
  }
  func.func @transform_6(%arg0: i32) -> (i32, i32) {
    %c0_i32 = arith.constant 0 : i32
    %c0_i32_0 = arith.constant 0 : i32
    %c0_i32_1 = arith.constant 0 : i32
    return %c0_i32, %c0_i32_0 : i32, i32
  }
  func.func @transform_7(%arg0: i32) -> (i32, i32) {
    %c0_i32 = arith.constant 0 : i32
    %c0_i32_0 = arith.constant 0 : i32
    %c0_i32_1 = arith.constant 0 : i32
    return %c0_i32, %c0_i32_0 : i32, i32
  }
  func.func @transform_8(%arg0: i32) -> (i32, i32) {
    %c0_i32 = arith.constant 0 : i32
    %c0_i32_0 = arith.constant 0 : i32
    %c0_i32_1 = arith.constant 0 : i32
    return %c0_i32, %c0_i32_0 : i32, i32
  }
  func.func @transform_9(%arg0: i32) -> (i32, i32) {
    %c0_i32 = arith.constant 0 : i32
    %c0_i32_0 = arith.constant 0 : i32
    return %arg0, %c0_i32 : i32, i32
  }
}

</mosaic_0001>

<llo_original>
// kernel: tpu_custom_call.1
$region0: #{tpu_custom_call.1}
  #allocation0 [shape = 'u32[]', space=smem, size = 0x4, offset = 0x4, fixed_abs, tag = 'smem constant byte address 0x4 - core index']
  #allocation1 [shape = 'u32[144,128]{1,0:T(1,128)}', space=vmem, size = 0x12000, scoped, tag = 'internal scratch']
  %s0 = inlined_call_operand.vmem [shape: bf16[16,64], index: 0, kind: input, shape index: {}]
  %s1 = inlined_call_operand.vmem [shape: bf16[64,70], index: 1, kind: input, shape index: {}]
  %s2 = inlined_call_operand.vmem [shape: f32[1,70], index: 2, kind: input, shape index: {}]
  %s3 = inlined_call_operand.vmem [shape: bf16[70,24], index: 3, kind: input, shape index: {}]
  %s4 = inlined_call_operand.vmem [shape: f32[1,24], index: 4, kind: input, shape index: {}]
  %s5 = inlined_call_operand.vmem [shape: bf16[24,6], index: 5, kind: input, shape index: {}]
  %s6 = inlined_call_operand.vmem [shape: f32[1,6], index: 6, kind: input, shape index: {}]
  %s7 = inlined_call_operand.vmem [shape: bf16[6,3], index: 7, kind: input, shape index: {}]
  %s8 = inlined_call_operand.vmem [shape: f32[1,3], index: 8, kind: input, shape index: {}]
  %s9 = inlined_call_operand.vmem [shape: f32[16,3], index: 9, kind: output, shape index: {}]
  %s10 = sld [smem:[#allocation0]]
  $region69: #{tpu_custom_call.1} parent=0
    _
  %s12 = ssub.s32 1, %s10
  %s13 = scalar_select 0, %s12, %s10
  loop: start=0, step=1, limit=4
  $region2: #{tpu_custom_call.1} parent=0 // loop_pre_header
    _
  $region3: #{tpu_custom_call.1} parent=0 // loop_header
    %s15 = sphi 0, %s19
    %p16 = scmp.ge.s32.totalorder %s15, 4
    %s25 = sphi 0, %s27
    %s28 = sphi 0, %s25
    %s29 = sphi 0, %s28
    %s45 = sphi 0, %s29
    %s49 = sphi 0, %s49
    %s51 = sphi 0, %s49
    %s52 = sphi 0, %s51
    %s66 = sphi 0, %s52
    %s70 = sphi 0, %s70
    %s72 = sphi 0, %s70
    %s73 = sphi 0, %s72
    %s87 = sphi 0, %s73
    %s91 = sphi 0, %s91
    %s93 = sphi 0, %s91
    %s94 = sphi 0, %s93
    %s108 = sphi 0, %s94
    %s112 = sphi 0, %s112
    %s114 = sphi 0, %s112
    %s115 = sphi 0, %s114
    %s129 = sphi 0, %s115
    %s133 = sphi 0, %s133
    %s135 = sphi 0, %s133
    %s136 = sphi 0, %s135
    %s150 = sphi 0, %s136
    %s154 = sphi 0, %s154
    %s156 = sphi 0, %s154
    %s157 = sphi 0, %s156
    %s171 = sphi 0, %s157
    %s175 = sphi 0, %s175
    %s177 = sphi 0, %s175
    %s178 = sphi 0, %s177
    %s192 = sphi 0, %s178
    %s196 = sphi 0, %s196
    %s198 = sphi 0, %s196
    %s199 = sphi 0, %s198
    %s213 = sphi 0, %s199
    %s219 = sphi 0, %s221
    %s222 = sphi 0, %s219
    %s223 = sphi 0, %s222
    %s239 = sphi 0, %s223
  $region4: #{tpu_custom_call.1} parent=0 // loop_header_branch
    %18 = sbr.rel (%p16) target = $region8
  $region5: #{tpu_custom_call.1} parent=0 // loop_body
    %s20 = ssub.s32 %s15, 1
    %s21 = ssub.s32 %s15, 2
    %s22 = sadd.s32 %s15, 1
    %s23 = ssub.s32 %s15, %s22
    %p24 = scmp.eq.s32.totalorder %s23, 0
    %s26 = sadd.s32 %s25, 1
    %s27 = scalar_select %p24, %s25, %s26
    %p30 = pneg %p24
    %p31 = scmp.eq.s32.totalorder %s15, 1
    %p32 = por %p30, %p31
    %p33 = scmp.ne.s32.totalorder %s25, %s28
    %p34 = scmp.eq.s32.totalorder %s15, 0
    %p35 = por %p33, %p34
    %p36 = scmp.ne.s32.totalorder %s25, %s28
    %p37 = scmp.eq.s32.totalorder %s20, 1
    %p38 = por %p36, %p37
    %p39 = scmp.ne.s32.totalorder %s28, %s29
    %p40 = scmp.eq.s32.totalorder %s20, 0
    %p41 = por %p39, %p40
    %p42 = scmp.ne.s32.totalorder %s28, %s29
    %p43 = scmp.eq.s32.totalorder %s21, 1
    %p44 = por %p42, %p43
    %p46 = scmp.ne.s32.totalorder %s29, %s45
    %p47 = scmp.eq.s32.totalorder %s21, 0
    %p48 = por %p46, %p47
    %s50 = sadd.s32 %s49, 1
    %p53 = scmp.eq.s32.totalorder %s15, 1
    %p54 = scmp.ne.s32.totalorder %s49, %s51
    %p55 = scmp.eq.s32.totalorder %s15, 0
    %p56 = por %p54, %p55
    %p57 = scmp.ne.s32.totalorder %s49, %s51
    %p58 = scmp.eq.s32.totalorder %s20, 1
    %p59 = por %p57, %p58
    %p60 = scmp.ne.s32.totalorder %s51, %s52
    %p61 = scmp.eq.s32.totalorder %s20, 0
    %p62 = por %p60, %p61
    %p63 = scmp.ne.s32.totalorder %s51, %s52
    %p64 = scmp.eq.s32.totalorder %s21, 1
    %p65 = por %p63, %p64
    %p67 = scmp.ne.s32.totalorder %s52, %s66
    %p68 = scmp.eq.s32.totalorder %s21, 0
    %p69 = por %p67, %p68
    %s71 = sadd.s32 %s70, 1
    %p74 = scmp.eq.s32.totalorder %s15, 1
    %p75 = scmp.ne.s32.totalorder %s70, %s72
    %p76 = scmp.eq.s32.totalorder %s15, 0
    %p77 = por %p75, %p76
    %p78 = scmp.ne.s32.totalorder %s70, %s72
    %p79 = scmp.eq.s32.totalorder %s20, 1
    %p80 = por %p78, %p79
    %p81 = scmp.ne.s32.totalorder %s72, %s73
    %p82 = scmp.eq.s32.totalorder %s20, 0
    %p83 = por %p81, %p82
    %p84 = scmp.ne.s32.totalorder %s72, %s73
    %p85 = scmp.eq.s32.totalorder %s21, 1
    %p86 = por %p84, %p85
    %p88 = scmp.ne.s32.totalorder %s73, %s87
    %p89 = scmp.eq.s32.totalorder %s21, 0
    %p90 = por %p88, %p89
    %s92 = sadd.s32 %s91, 1
    %p95 = scmp.eq.s32.totalorder %s15, 1
    %p96 = scmp.ne.s32.totalorder %s91, %s93
    %p97 = scmp.eq.s32.totalorder %s15, 0
    %p98 = por %p96, %p97
    %p99 = scmp.ne.s32.totalorder %s91, %s93
    %p100 = scmp.eq.s32.totalorder %s20, 1
    %p101 = por %p99, %p100
    %p102 = scmp.ne.s32.totalorder %s93, %s94
    %p103 = scmp.eq.s32.totalorder %s20, 0
    %p104 = por %p102, %p103
    %p105 = scmp.ne.s32.totalorder %s93, %s94
    %p106 = scmp.eq.s32.totalorder %s21, 1
    %p107 = por %p105, %p106
    %p109 = scmp.ne.s32.totalorder %s94, %s108
    %p110 = scmp.eq.s32.totalorder %s21, 0
    %p111 = por %p109, %p110
    %s113 = sadd.s32 %s112, 1
    %p116 = scmp.eq.s32.totalorder %s15, 1
    %p117 = scmp.ne.s32.totalorder %s112, %s114
    %p118 = scmp.eq.s32.totalorder %s15, 0
    %p119 = por %p117, %p118
    %p120 = scmp.ne.s32.totalorder %s112, %s114
    %p121 = scmp.eq.s32.totalorder %s20, 1
    %p122 = por %p120, %p121
    %p123 = scmp.ne.s32.totalorder %s114, %s115
    %p124 = scmp.eq.s32.totalorder %s20, 0
    %p125 = por %p123, %p124
    %p126 = scmp.ne.s32.totalorder %s114, %s115
    %p127 = scmp.eq.s32.totalorder %s21, 1
    %p128 = por %p126, %p127
    %p130 = scmp.ne.s32.totalorder %s115, %s129
    %p131 = scmp.eq.s32.totalorder %s21, 0
    %p132 = por %p130, %p131
    %s134 = sadd.s32 %s133, 1
    %p137 = scmp.eq.s32.totalorder %s15, 1
    %p138 = scmp.ne.s32.totalorder %s133, %s135
    %p139 = scmp.eq.s32.totalorder %s15, 0
    %p140 = por %p138, %p139
    %p141 = scmp.ne.s32.totalorder %s133, %s135
    %p142 = scmp.eq.s32.totalorder %s20, 1
    %p143 = por %p141, %p142
    %p144 = scmp.ne.s32.totalorder %s135, %s136
    %p145 = scmp.eq.s32.totalorder %s20, 0
    %p146 = por %p144, %p145
    %p147 = scmp.ne.s32.totalorder %s135, %s136
    %p148 = scmp.eq.s32.totalorder %s21, 1
    %p149 = por %p147, %p148
    %p151 = scmp.ne.s32.totalorder %s136, %s150
    %p152 = scmp.eq.s32.totalorder %s21, 0
    %p153 = por %p151, %p152
    %s155 = sadd.s32 %s154, 1
    %p158 = scmp.eq.s32.totalorder %s15, 1
    %p159 = scmp.ne.s32.totalorder %s154, %s156
    %p160 = scmp.eq.s32.totalorder %s15, 0
    %p161 = por %p159, %p160
    %p162 = scmp.ne.s32.totalorder %s154, %s156
    %p163 = scmp.eq.s32.totalorder %s20, 1
    %p164 = por %p162, %p163
    %p165 = scmp.ne.s32.totalorder %s156, %s157
    %p166 = scmp.eq.s32.totalorder %s20, 0
    %p167 = por %p165, %p166
    %p168 = scmp.ne.s32.totalorder %s156, %s157
    %p169 = scmp.eq.s32.totalorder %s21, 1
    %p170 = por %p168, %p169
    %p172 = scmp.ne.s32.totalorder %s157, %s171
    %p173 = scmp.eq.s32.totalorder %s21, 0
    %p174 = por %p172, %p173
    %s176 = sadd.s32 %s175, 1
    %p179 = scmp.eq.s32.totalorder %s15, 1
    %p180 = scmp.ne.s32.totalorder %s175, %s177
    %p181 = scmp.eq.s32.totalorder %s15, 0
    %p182 = por %p180, %p181
    %p183 = scmp.ne.s32.totalorder %s175, %s177
    %p184 = scmp.eq.s32.totalorder %s20, 1
    %p185 = por %p183, %p184
    %p186 = scmp.ne.s32.totalorder %s177, %s178
    %p187 = scmp.eq.s32.totalorder %s20, 0
    %p188 = por %p186, %p187
    %p189 = scmp.ne.s32.totalorder %s177, %s178
    %p190 = scmp.eq.s32.totalorder %s21, 1
    %p191 = por %p189, %p190
    %p193 = scmp.ne.s32.totalorder %s178, %s192
    %p194 = scmp.eq.s32.totalorder %s21, 0
    %p195 = por %p193, %p194
    %s197 = sadd.s32 %s196, 1
    %p200 = scmp.eq.s32.totalorder %s15, 1
    %p201 = scmp.ne.s32.totalorder %s196, %s198
    %p202 = scmp.eq.s32.totalorder %s15, 0
    %p203 = por %p201, %p202
    %p204 = scmp.ne.s32.totalorder %s196, %s198
    %p205 = scmp.eq.s32.totalorder %s20, 1
    %p206 = por %p204, %p205
    %p207 = scmp.ne.s32.totalorder %s198, %s199
    %p208 = scmp.eq.s32.totalorder %s20, 0
    %p209 = por %p207, %p208
    %p210 = scmp.ne.s32.totalorder %s198, %s199
    %p211 = scmp.eq.s32.totalorder %s21, 1
    %p212 = por %p210, %p211
    %p214 = scmp.ne.s32.totalorder %s199, %s213
    %p215 = scmp.eq.s32.totalorder %s21, 0
    %p216 = por %p214, %p215
    %s217 = ssub.s32 %s15, %s22
    %p218 = scmp.eq.s32.totalorder %s217, 0
    %s220 = sadd.s32 %s219, 1
    %s221 = scalar_select %p218, %s219, %s220
    %p224 = pneg %p218
    %p225 = scmp.eq.s32.totalorder %s15, 1
    %p226 = por %p224, %p225
    %p227 = scmp.ne.s32.totalorder %s219, %s222
    %p228 = scmp.eq.s32.totalorder %s15, 0
    %p229 = por %p227, %p228
    %p230 = scmp.ne.s32.totalorder %s219, %s222
    %p231 = scmp.eq.s32.totalorder %s20, 1
    %p232 = por %p230, %p231
    %p233 = scmp.ne.s32.totalorder %s222, %s223
    %p234 = scmp.eq.s32.totalorder %s20, 0
    %p235 = por %p233, %p234
    %p236 = scmp.ne.s32.totalorder %s222, %s223
    %p237 = scmp.eq.s32.totalorder %s21, 1
    %p238 = por %p236, %p237
    %p240 = scmp.ne.s32.totalorder %s223, %s239
    %p241 = scmp.eq.s32.totalorder %s21, 0
    %p242 = por %p240, %p241
    %p243 = scmp.le.s32.totalorder 1, %s15
    %p244 = scmp.lt.s32.totalorder %s15, 3
    %p245 = pnand %p243, %p244
    %p246 = pneg %p245
    // Predicated region
    $region9: #{tpu_custom_call.1} parent=5 // pred_check
      _
    $region10: #{tpu_custom_call.1} parent=5 // pred_check_branch
      %248 = sbr.rel (%p245) target = $region12
    $region11: #{tpu_custom_call.1} parent=5 // pred_region
      %s249 = ssub.s32 %s15, 1
      // Predicated region
      $region13: #{tpu_custom_call.1} parent=11 // pred_check
        %p250 = pneg %p62
      $region14: #{tpu_custom_call.1} parent=11 // pred_check_branch
        %252 = sbr.rel (%p250) target = $region16
      $region15: #{tpu_custom_call.1} parent=11 // pred_region
        _
      $region16: #{tpu_custom_call.1} parent=11 // pred_fallthru
        _
      // Predicated region
      $region17: #{tpu_custom_call.1} parent=11 // pred_check
        %p253 = pneg %p83
      $region18: #{tpu_custom_call.1} parent=11 // pred_check_branch
        %255 = sbr.rel (%p253) target = $region20
      $region19: #{tpu_custom_call.1} parent=11 // pred_region
        _
      $region20: #{tpu_custom_call.1} parent=11 // pred_fallthru
        _
      // Predicated region
      $region21: #{tpu_custom_call.1} parent=11 // pred_check
        %p256 = pneg %p104
      $region22: #{tpu_custom_call.1} parent=11 // pred_check_branch
        %258 = sbr.rel (%p256) target = $region24
      $region23: #{tpu_custom_call.1} parent=11 // pred_region
        _
      $region24: #{tpu_custom_call.1} parent=11 // pred_fallthru
        _
      // Predicated region
      $region25: #{tpu_custom_call.1} parent=11 // pred_check
        %p259 = pneg %p125
      $region26: #{tpu_custom_call.1} parent=11 // pred_check_branch
        %261 = sbr.rel (%p259) target = $region28
      $region27: #{tpu_custom_call.1} parent=11 // pred_region
        _
      $region28: #{tpu_custom_call.1} parent=11 // pred_fallthru
        _
      // Predicated region
      $region29: #{tpu_custom_call.1} parent=11 // pred_check
        %p262 = pneg %p146
      $region30: #{tpu_custom_call.1} parent=11 // pred_check_branch
        %264 = sbr.rel (%p262) target = $region32
      $region31: #{tpu_custom_call.1} parent=11 // pred_region
        _
      $region32: #{tpu_custom_call.1} parent=11 // pred_fallthru
        _
      // Predicated region
      $region33: #{tpu_custom_call.1} parent=11 // pred_check
        %p265 = pneg %p167
      $region34: #{tpu_custom_call.1} parent=11 // pred_check_branch
        %267 = sbr.rel (%p265) target = $region36
      $region35: #{tpu_custom_call.1} parent=11 // pred_region
        _
      $region36: #{tpu_custom_call.1} parent=11 // pred_fallthru
        _
      // Predicated region
      $region37: #{tpu_custom_call.1} parent=11 // pred_check
        %p268 = pneg %p188
      $region38: #{tpu_custom_call.1} parent=11 // pred_check_branch
        %270 = sbr.rel (%p268) target = $region40
      $region39: #{tpu_custom_call.1} parent=11 // pred_region
        _
      $region40: #{tpu_custom_call.1} parent=11 // pred_fallthru
        _
      // Predicated region
      $region41: #{tpu_custom_call.1} parent=11 // pred_check
        %p271 = pneg %p209
      $region42: #{tpu_custom_call.1} parent=11 // pred_check_branch
        %273 = sbr.rel (%p271) target = $region44
      $region43: #{tpu_custom_call.1} parent=11 // pred_region
        _
      $region44: #{tpu_custom_call.1} parent=11 // pred_fallthru
        _
    $region12: #{tpu_custom_call.1} parent=5 // pred_fallthru
      _
    %p274 = scmp.lt.s32.totalorder %s15, 2
    // Predicated region
    $region45: #{tpu_custom_call.1} parent=5 // pred_check
      %p275 = pneg %p274
    $region46: #{tpu_custom_call.1} parent=5 // pred_check_branch
      %277 = sbr.rel (%p275) target = $region48
    $region47: #{tpu_custom_call.1} parent=5 // pred_region
      // Predicated region
      $region49: #{tpu_custom_call.1} parent=47 // pred_check
        %p278 = pneg %p35
      $region50: #{tpu_custom_call.1} parent=47 // pred_check_branch
        %280 = sbr.rel (%p278) target = $region52
      $region51: #{tpu_custom_call.1} parent=47 // pred_region
        %p281 = scmp.lt.s32.totalorder %s15, 1
        %s282 = scalar_select %p281, %s15, 1
        %s283 = smul.addr %s282, 4
        %s284 = scalar_lea.vmem %s0, %s283
      $region52: #{tpu_custom_call.1} parent=47 // pred_fallthru
        _
    $region48: #{tpu_custom_call.1} parent=5 // pred_fallthru
      _
    %p285 = scmp.le.s32.totalorder 1, %s15
    %p286 = scmp.lt.s32.totalorder %s15, 3
    %p287 = pnand %p285, %p286
    %p288 = pneg %p287
    // Predicated region
    $region53: #{tpu_custom_call.1} parent=5 // pred_check
      _
    $region54: #{tpu_custom_call.1} parent=5 // pred_check_branch
      %290 = sbr.rel (%p287) target = $region56
    $region55: #{tpu_custom_call.1} parent=5 // pred_region
      %s291 = ssub.s32 %s15, 1
      %p292 = scmp.lt.s32.totalorder %s20, 1
      %s293 = scalar_select %p292, %s20, 1
      %s294 = smul.addr %s293, 4
      %s295 = scalar_lea.vmem %s0, %s294
      %p296 = pneg %p41
      %p297 = pneg %p38
      %p298 = pneg %p62
      %p299 = pneg %p59
      %p300 = pneg %p83
      %p301 = pneg %p80
      %p302 = pneg %p104
      %p303 = pneg %p101
      %p304 = pneg %p125
      %p305 = pneg %p122
      %p306 = pneg %p146
      %p307 = pneg %p143
      %p308 = pneg %p167
      %p309 = pneg %p164
      %p310 = pneg %p188
      %p311 = pneg %p185
      %p312 = pneg %p209
      %p313 = pneg %p206
      %p314 = pneg %p235
      %p315 = pneg %p232
      %p316 = scmp.lt.s32.totalorder %s20, 1
      %s317 = scalar_select %p316, %s20, 1
      %s318 = smul.addr %s317, 8
      %s319 = scalar_lea.vmem %s9, %s318
      %p320 = scmp.lt.s32.totalorder %s20, 1
      %s321 = scalar_select %p320, %s20, 1
      %s322 = smul.addr %s321, 4
      %s323 = scalar_lea.vmem %s0, %s322
      %p324 = scmp.lt.s32.totalorder %s20, 1
      %s325 = scalar_select %p324, %s20, 1
      %s326 = smul.addr %s325, 8
      %s327 = scalar_lea.vmem %s9, %s326
      %v329 = vld [vmem:[%s323] sm:$0xf]
      %v330 = vld [vmem:[%s1] sm:$0xf]
      %v331 = vld [vmem:[%s1 + $0x4] sm:$0xf]
      %v332 = vld [vmem:[%s1 + $0x8] sm:$0xf]
      %v333 = vld [vmem:[%s1 + $0xc] sm:$0xf]
      %v334 = vld [vmem:[%s1 + $0x10] sm:$0xf]
      %v335 = vld [vmem:[%s1 + $0x14] sm:$0xf]
      %v336 = vld [vmem:[%s1 + $0x18] sm:$0xf]
      %v337 = vld [vmem:[%s1 + $0x1c] sm:$0xf]
      %v338 = vld [vmem:[%s2] sm:$0x1]
      %v340 = vlaneseq
      %v341 = vshrl.u32 %v340, 7
      %v342 = vsub.s32 0, %v341
      %v343 = vrot.slane %v338, %v342
      %v353 = vunpack.c.l.b16 %v330
      %v354 = vunpack.c.l.b16 %v331
      %v355 = vunpack.c.l.b16 %v332
      %v356 = vunpack.c.l.b16 %v333
      %v357 = vunpack.c.l.b16 %v334
      %v358 = vunpack.c.l.b16 %v335
      %v359 = vunpack.c.l.b16 %v336
      %v360 = vunpack.c.l.b16 %v337
      %v361 = vpack.c.b16 %v354, %v353
      %v362 = vpack.c.b16 %v356, %v355
      %v363 = vpack.c.b16 %v358, %v357
      %v364 = vpack.c.b16 %v360, %v359
      %vm369 = vcmask 523264
      %v371 = vsel %vm369, %v329, 0
      %373 = vmatprep.subr.bf16.mxu0 0
      %374 = vmatpush1.bf16.msra.mxu0 0
      %375 = vmatprep.subr.bf16.mxu0 0
      %376 = vmatpush1.bf16.msra.mxu0 0
      %377 = vmatprep.subr.bf16.mxu0 0
      %378 = vmatpush1.bf16.msra.mxu0 0
      %379 = vmatprep.subr.bf16.mxu0 0
      %380 = vmatpush1.bf16.msra.mxu0 0
      %381 = vmatprep.subr.bf16.mxu0 0
      %382 = vmatpush1.bf16.msra.mxu0 %v364
      %383 = vmatprep.subr.bf16.mxu0 0
      %384 = vmatpush1.bf16.msra.mxu0 %v363
      %385 = vmatprep.subr.bf16.mxu0 0
      %386 = vmatpush1.bf16.msra.mxu0 %v362
      %387 = vmatprep.subr.bf16.mxu0 0
      %388 = vmatpush1.bf16.msra.mxu0 %v361
      %389 = vmatprep.subr.bf16.mxu0 0
      %390 = vmatpush2.bf16.msra.mxu0 0
      %391 = vmatprep.subr.bf16.mxu0 0
      %392 = vmatpush2.bf16.msra.mxu0 0
      %393 = vmatprep.subr.bf16.mxu0 0
      %394 = vmatpush2.bf16.msra.mxu0 0
      %395 = vmatprep.subr.bf16.mxu0 0
      %396 = vmatpush2.bf16.msra.mxu0 0
      %397 = vmatprep.subr.bf16.mxu0 0
      %398 = vmatpush2.bf16.msra.mxu0 0
      %399 = vmatprep.subr.bf16.mxu0 0
      %400 = vmatpush2.bf16.msra.mxu0 0
      %401 = vmatprep.subr.bf16.mxu0 0
      %402 = vmatpush2.bf16.msra.mxu0 0
      %403 = vmatprep.subr.bf16.mxu0 0
      %404 = vmatpush2.bf16.msra.mxu0 0
      %405 = vmatprep.mubr.bf16.mxu0 0
      %406 = vmatmul.mubr.bf16.gmra.mxu0 %v371
      %v407 = vpop.f32.mrf.mxu0
      %v408 = vadd.f32 %v343, %v407
      %v409 = vpop.f32.mrf.mxu0
      %v410 = vpop.f32.mrf.mxu0
      %v411 = vpop.f32.mrf.mxu0
      %412 = vdwg.mxu0
      %v413 = vmax.f32 %v408, 0.0
      %v414 = vpack.c.bf16 %v413, %v413
      %v415 = vld [vmem:[%s3] sm:$0xf]
      %v416 = vld [vmem:[%s3 + $0x4] sm:$0xf]
      %v417 = vld [vmem:[%s3 + $0x8] sm:$0xf]
      %v418 = vld [vmem:[%s3 + $0xc] sm:$0xf]
      %v419 = vld [vmem:[%s3 + $0x10] sm:$0xf]
      %v420 = vld [vmem:[%s3 + $0x14] sm:$0xf]
      %v421 = vld [vmem:[%s3 + $0x18] sm:$0xf]
      %v422 = vld [vmem:[%s3 + $0x1c] sm:$0xf]
      %v423 = vld [vmem:[%s3 + $0x20] sm:$0x7]
      %v424 = vld [vmem:[%s4] sm:$0x1]
      %v426 = vlaneseq
      %v427 = vshrl.u32 %v426, 7
      %v428 = vsub.s32 0, %v427
      %v429 = vrot.slane %v424, %v428
      %v440 = vunpack.c.l.b16 %v415
      %v441 = vunpack.c.l.b16 %v416
      %v442 = vunpack.c.l.b16 %v417
      %v443 = vunpack.c.l.b16 %v418
      %v444 = vunpack.c.l.b16 %v419
      %v445 = vunpack.c.l.b16 %v420
      %v446 = vunpack.c.l.b16 %v421
      %v447 = vunpack.c.l.b16 %v422
      %v448 = vunpack.c.l.b16 %v423
      %v449 = vpack.c.b16 %v441, %v440
      %v450 = vpack.c.b16 %v443, %v442
      %v451 = vpack.c.b16 %v445, %v444
      %v452 = vpack.c.b16 %v447, %v446
      %v453 = vpack.c.b16 %v448, %v448
      %vm458 = vcmask 572416
      %v460 = vsel %vm458, %v414, 0
      %vm462 = vcmask 1042432
      %v464 = vsel %vm462, %v453, 0
      %466 = vmatprep.subr.bf16.mxu0 0
      %467 = vmatpush1.bf16.msra.mxu0 0
      %468 = vmatprep.subr.bf16.mxu0 0
      %469 = vmatpush1.bf16.msra.mxu0 0
      %470 = vmatprep.subr.bf16.mxu0 0
      %471 = vmatpush1.bf16.msra.mxu0 0
      %472 = vmatprep.subr.bf16.mxu0 0
      %473 = vmatpush1.bf16.msra.mxu0 %v464
      %474 = vmatprep.subr.bf16.mxu0 0
      %475 = vmatpush1.bf16.msra.mxu0 %v452
      %476 = vmatprep.subr.bf16.mxu0 0
      %477 = vmatpush1.bf16.msra.mxu0 %v451
      %478 = vmatprep.subr.bf16.mxu0 0
      %479 = vmatpush1.bf16.msra.mxu0 %v450
      %480 = vmatprep.subr.bf16.mxu0 0
      %481 = vmatpush1.bf16.msra.mxu0 %v449
      %482 = vmatprep.subr.bf16.mxu0 0
      %483 = vmatpush2.bf16.msra.mxu0 0
      %484 = vmatprep.subr.bf16.mxu0 0
      %485 = vmatpush2.bf16.msra.mxu0 0
      %486 = vmatprep.subr.bf16.mxu0 0
      %487 = vmatpush2.bf16.msra.mxu0 0
      %488 = vmatprep.subr.bf16.mxu0 0
      %489 = vmatpush2.bf16.msra.mxu0 0
      %490 = vmatprep.subr.bf16.mxu0 0
      %491 = vmatpush2.bf16.msra.mxu0 0
      %492 = vmatprep.subr.bf16.mxu0 0
      %493 = vmatpush2.bf16.msra.mxu0 0
      %494 = vmatprep.subr.bf16.mxu0 0
      %495 = vmatpush2.bf16.msra.mxu0 0
      %496 = vmatprep.subr.bf16.mxu0 0
      %497 = vmatpush2.bf16.msra.mxu0 0
      %498 = vmatprep.mubr.bf16.mxu0 0
      %499 = vmatmul.mubr.bf16.gmra.mxu0 %v460
      %v500 = vpop.f32.mrf.mxu0
      %v501 = vadd.f32 %v429, %v500
      %v502 = vpop.f32.mrf.mxu0
      %v503 = vpop.f32.mrf.mxu0
      %v504 = vpop.f32.mrf.mxu0
      %505 = vdwg.mxu0
      %v506 = vmax.f32 %v501, 0.0
      %v507 = vpack.c.bf16 %v506, %v506
      %v508 = vld [vmem:[%s5] sm:$0xf]
      %v509 = vld [vmem:[%s5 + $0x4] sm:$0xf]
      %v510 = vld [vmem:[%s5 + $0x8] sm:$0xf]
      %v511 = vld [vmem:[%s6] sm:$0x1]
      %v513 = vlaneseq
      %v514 = vshrl.u32 %v513, 7
      %v515 = vsub.s32 0, %v514
      %v516 = vrot.slane %v511, %v515
      %v521 = vunpack.c.l.b16 %v508
      %v522 = vunpack.c.l.b16 %v509
      %v523 = vunpack.c.l.b16 %v510
      %v524 = vpack.c.b16 %v522, %v521
      %v525 = vpack.c.b16 %v523, %v523
      %vm527 = vcmask 195584
      %v529 = vsel %vm527, %v507, 0
      %vm531 = vcmask 1043456
      %v533 = vsel %vm531, %v525, 0
      %535 = vmatprep.subr.bf16.mxu0 0
      %536 = vmatpush1.bf16.msra.mxu0 0
      %537 = vmatprep.subr.bf16.mxu0 0
      %538 = vmatpush1.bf16.msra.mxu0 0
      %539 = vmatprep.subr.bf16.mxu0 0
      %540 = vmatpush1.bf16.msra.mxu0 0
      %541 = vmatprep.subr.bf16.mxu0 0
      %542 = vmatpush1.bf16.msra.mxu0 0
      %543 = vmatprep.subr.bf16.mxu0 0
      %544 = vmatpush1.bf16.msra.mxu0 0
      %545 = vmatprep.subr.bf16.mxu0 0
      %546 = vmatpush1.bf16.msra.mxu0 0
      %547 = vmatprep.subr.bf16.mxu0 0
      %548 = vmatpush1.bf16.msra.mxu0 %v533
      %549 = vmatprep.subr.bf16.mxu0 0
      %550 = vmatpush1.bf16.msra.mxu0 %v524
      %551 = vmatprep.subr.bf16.mxu0 0
      %552 = vmatpush2.bf16.msra.mxu0 0
      %553 = vmatprep.subr.bf16.mxu0 0
      %554 = vmatpush2.bf16.msra.mxu0 0
      %555 = vmatprep.subr.bf16.mxu0 0
      %556 = vmatpush2.bf16.msra.mxu0 0
      %557 = vmatprep.subr.bf16.mxu0 0
      %558 = vmatpush2.bf16.msra.mxu0 0
      %559 = vmatprep.subr.bf16.mxu0 0
      %560 = vmatpush2.bf16.msra.mxu0 0
      %561 = vmatprep.subr.bf16.mxu0 0
      %562 = vmatpush2.bf16.msra.mxu0 0
      %563 = vmatprep.subr.bf16.mxu0 0
      %564 = vmatpush2.bf16.msra.mxu0 0
      %565 = vmatprep.subr.bf16.mxu0 0
      %566 = vmatpush2.bf16.msra.mxu0 0
      %567 = vmatprep.mubr.bf16.mxu0 0
      %568 = vmatmul.mubr.bf16.gmra.mxu0 %v529
      %v569 = vpop.f32.mrf.mxu0
      %v570 = vadd.f32 %v516, %v569
      %v571 = vpop.f32.mrf.mxu0
      %v572 = vpop.f32.mrf.mxu0
      %v573 = vpop.f32.mrf.mxu0
      %574 = vdwg.mxu0
      %v575 = vxor.u32 %v570, 2147483648
      %v576 = vmul.f32 %v575, 1.442695
      %v577 = vpow.pop %v576
      %v578 = vadd.f32 %v577, 1.0
      %v579 = vrcp.pop %v578
      %v580 = vmul.f32 1.0, %v579
      %v581 = vpack.c.bf16 %v580, %v580
      %v582 = vld [vmem:[%s7] sm:$0x7]
      %v583 = vld [vmem:[%s8] sm:$0x1]
      %v585 = vlaneseq
      %v586 = vshrl.u32 %v585, 7
      %v587 = vsub.s32 0, %v586
      %v588 = vrot.slane %v583, %v587
      %vm590 = vcmask 48128
      %v592 = vsel %vm590, %v581, 0
      %v595 = vsel %vm462, %v582, 0
      %597 = vmatprep.subr.bf16.mxu0 0
      %598 = vmatpush1.bf16.msra.mxu0 0
      %599 = vmatprep.subr.bf16.mxu0 0
      %600 = vmatpush1.bf16.msra.mxu0 0
      %601 = vmatprep.subr.bf16.mxu0 0
      %602 = vmatpush1.bf16.msra.mxu0 0
      %603 = vmatprep.subr.bf16.mxu0 0
      %604 = vmatpush1.bf16.msra.mxu0 0
      %605 = vmatprep.subr.bf16.mxu0 0
      %606 = vmatpush1.bf16.msra.mxu0 0
      %607 = vmatprep.subr.bf16.mxu0 0
      %608 = vmatpush1.bf16.msra.mxu0 0
      %609 = vmatprep.subr.bf16.mxu0 0
      %610 = vmatpush1.bf16.msra.mxu0 0
      %611 = vmatprep.subr.bf16.mxu0 0
      %612 = vmatpush1.bf16.msra.mxu0 %v595
      %613 = vmatprep.subr.bf16.mxu0 0
      %614 = vmatpush2.bf16.msra.mxu0 0
      %615 = vmatprep.subr.bf16.mxu0 0
      %616 = vmatpush2.bf16.msra.mxu0 0
      %617 = vmatprep.subr.bf16.mxu0 0
      %618 = vmatpush2.bf16.msra.mxu0 0
      %619 = vmatprep.subr.bf16.mxu0 0
      %620 = vmatpush2.bf16.msra.mxu0 0
      %621 = vmatprep.subr.bf16.mxu0 0
      %622 = vmatpush2.bf16.msra.mxu0 0
      %623 = vmatprep.subr.bf16.mxu0 0
      %624 = vmatpush2.bf16.msra.mxu0 0
      %625 = vmatprep.subr.bf16.mxu0 0
      %626 = vmatpush2.bf16.msra.mxu0 0
      %627 = vmatprep.subr.bf16.mxu0 0
      %628 = vmatpush2.bf16.msra.mxu0 0
      %629 = vmatprep.mubr.bf16.mxu0 0
      %630 = vmatmul.mubr.bf16.gmra.mxu0 %v592
      %v631 = vpop.f32.mrf.mxu0
      %v632 = vadd.f32 %v588, %v631
      %v633 = vpop.f32.mrf.mxu0
      %v634 = vpop.f32.mrf.mxu0
      %v635 = vpop.f32.mrf.mxu0
      %636 = vdwg.mxu0
      %v637 = vxor.u32 %v632, 2147483648
      %v638 = vmul.f32 %v637, 1.442695
      %v639 = vpow.pop %v638
      %v640 = vadd.f32 %v639, 1.0
      %v641 = vrcp.pop %v640
      %v642 = vmul.f32 1.0, %v641
      %vm643 = vcmask 23552
      %644 = vst.msk [vmem:[%s327] sm:$0xff] %vm643, %v642
      %p645 = scmp.lt.s32.totalorder %s20, 1
      %s646 = scalar_select %p645, %s20, 1
      %s647 = smul.addr %s646, 8
      %s648 = scalar_lea.vmem %s9, %s647
      // Predicated region
      $region57: #{tpu_custom_call.1} parent=55 // pred_check
        %p649 = pneg %p232
      $region58: #{tpu_custom_call.1} parent=55 // pred_check_branch
        %651 = sbr.rel (%p649) target = $region60
      $region59: #{tpu_custom_call.1} parent=55 // pred_region
        _
      $region60: #{tpu_custom_call.1} parent=55 // pred_fallthru
        _
    $region56: #{tpu_custom_call.1} parent=5 // pred_fallthru
      _
    %p652 = scmp.le.s32.totalorder 2, %s15
    // Predicated region
    $region61: #{tpu_custom_call.1} parent=5 // pred_check
      %p653 = pneg %p652
    $region62: #{tpu_custom_call.1} parent=5 // pred_check_branch
      %655 = sbr.rel (%p653) target = $region64
    $region63: #{tpu_custom_call.1} parent=5 // pred_region
      %s656 = ssub.s32 %s15, 2
      // Predicated region
      $region65: #{tpu_custom_call.1} parent=63 // pred_check
        %p657 = pneg %p238
      $region66: #{tpu_custom_call.1} parent=63 // pred_check_branch
        %659 = sbr.rel (%p657) target = $region68
      $region67: #{tpu_custom_call.1} parent=63 // pred_region
        %p660 = scmp.lt.s32.totalorder %s21, 1
        %s661 = scalar_select %p660, %s21, 1
        %s662 = smul.addr %s661, 8
        %s663 = scalar_lea.vmem %s9, %s662
      $region68: #{tpu_custom_call.1} parent=63 // pred_fallthru
        _
    $region64: #{tpu_custom_call.1} parent=5 // pred_fallthru
      _
  $region6: #{tpu_custom_call.1} parent=0 // loop_footer
    %s19 = sadd.s32 1, %s15
  $region7: #{tpu_custom_call.1} parent=0 // loop_footer_branch
    %14 = sbr.rel target = $region3
  $region8: #{tpu_custom_call.1} parent=0 // loop_exit
    _

</llo_original>
